<compile_context>
chip_gen: v7x
topology: tpu7x:2x2x1
jax: 0.10.0
libtpu: 0.0.40
codegen_flags: <defaults>
</compile_context>

<pallas_src>
import numpy as np
import jax
import jax.numpy as jnp
from jax import lax
from jax.experimental import pallas as pl

B, N = 2, 8            # graphs in batch, padded nodes per graph
IN_DIM = 16            # cfg.dataset.node_encoder_in_dim
EMB = 32               # emb_dim
HID = 50               # GeometricPE hidden width ("dims")

P = B * N * N          # 128 node pairs -> one full 128-lane vreg row
MP = B * N             # 16 padded nodes -> sublane-aligned output rows
ROWP_W = 64            # lane width of the packed row-oriented param slab (>= HID)
W_ENC_ROW = 8          # encoder weight starts on a sublane-aligned row of the slab
ROWP_ROWS = W_ENC_ROW + IN_DIM


# ---------------- in-kernel math helpers ----------------
def _erf(x):
    # Abramowitz & Stegun 7.1.26 (max abs err ~1.5e-7) -> matches torch's exact-erf GELU
    # well inside the 1e-4 tolerance.  The tanh-approx GELU / approx reciprocal suggested
    # in review were NOT adopted: their ~1e-3/1e-4 errors compound through the 50-wide
    # Linear(HID,1) reduction and would risk exact-erf parity; the kernel is launch-bound
    # anyway so the VALU saving is negligible here.
    p = 0.3275911
    a1, a2, a3, a4, a5 = (0.254829592, -0.284496736, 1.421413741,
                          -1.453152027, 1.061405429)
    sgn = jnp.where(x >= 0.0, 1.0, -1.0)
    ax = jnp.abs(x)
    t = 1.0 / (1.0 + p * ax)
    poly = ((((a5 * t + a4) * t + a3) * t + a2) * t + a1) * t
    return sgn * (1.0 - poly * jnp.exp(-ax * ax))


def _gelu(x):
    return 0.5 * x * (1.0 + _erf(x * 0.7071067811865476))


# ---------------- fused Pallas kernel (single grid point) ----------------
def fused_encoder_kernel(dv_ref, x_ref, colp_ref, rowp_ref, out_ref):
    d = dv_ref[0:1, :]                                   # (1, P)  pair distances
    valid = dv_ref[1:2, :] > 0.5                         # (1, P)  mask_i & mask_j & ~zero_dist

    w1 = colp_ref[:, 0:1]                                # (HID, 1)  Linear(1,HID).weight
    b1 = colp_ref[:, 1:2]                                # (HID, 1)  Linear(1,HID).bias
    w2 = rowp_ref[0:1, 0:HID]                            # (1, HID)  Linear(HID,1).weight
    b2 = rowp_ref[1:2, 0:1]                              # (1, 1)    Linear(HID,1).bias
    wemb = rowp_ref[2:3, 0:EMB]                          # (1, EMB)  Linear(1,EMB).weight
    btot = rowp_ref[3:4, 0:EMB]                          # (1, EMB)  bemb + b_enc (folded)
    wenc = rowp_ref[W_ENC_ROW:W_ENC_ROW + IN_DIM, 0:EMB] # (IN, EMB) encoder weight

    # GeometricPE MLP with the hidden activation laid out (HID, P): full 128-lane vregs.
    h = _gelu(w1 * d + b1)                               # (HID, P)   VPU broadcast + EUP exp
    # Linear(HID,1): contraction over HID on the MXU (idle slot), result stays lane-dense.
    y = jnp.dot(w2, h, preferred_element_type=jnp.float32) + b2      # (1, P)
    y = jnp.where(valid, _gelu(y), 0.0)                  # masked_fill(zero_dist | ~pair_mask)

    # sum over neighbours j for every padded node (flat node index = pair_index // N)
    rows = lax.broadcasted_iota(jnp.int32, (MP, P), 0)
    cols = lax.broadcasted_iota(jnp.int32, (MP, P), 1)
    lo = rows * N
    sel = jnp.logical_and(cols >= lo, cols < lo + N)     # (MP, P) row-group selector
    s = jnp.sum(jnp.where(sel, y, 0.0), axis=1, keepdims=True)       # (MP, 1)

    # encoder(x) + embed(s) with biases folded:  x @ Wenc + s * wemb + (b_enc + bemb)
    out_ref[...] = (jnp.dot(x_ref[...], wenc, preferred_element_type=jnp.float32)
                    + s * wemb + btot)                   # (MP, EMB)


# ---------------- wrapper ----------------
def linear_node_encoder(dist, zero_mask, mask, x_pad,
                        w1, b1, w2, b2, wemb, bemb, w_enc, b_enc):
    """Fused GeometricPE + Linear encoder. Returns dense-padded (B*N, EMB) node features."""
    # host-side packing: a few KB of layout/parameter plumbing, not compute
    dm = mask[:, :, None] & mask[:, None, :]
    valid = jnp.logical_and(~zero_mask, dm).astype(jnp.float32)
    dv = jnp.stack([dist.reshape(-1), valid.reshape(-1)], axis=0)           # (2, P)

    colp = jnp.concatenate([w1.reshape(HID, 1), b1.reshape(HID, 1)], axis=1)  # (HID, 2)

    rowp = jnp.zeros((ROWP_ROWS, ROWP_W), jnp.float32)
    rowp = rowp.at[0, :HID].set(w2.reshape(HID))
    rowp = rowp.at[1, 0].set(b2[0, 0])
    rowp = rowp.at[2, :EMB].set(wemb.reshape(EMB))
    rowp = rowp.at[3, :EMB].set((bemb + b_enc).reshape(EMB))
    rowp = rowp.at[W_ENC_ROW:W_ENC_ROW + IN_DIM, :EMB].set(w_enc)

    return pl.pallas_call(
        fused_encoder_kernel,
        out_shape=jax.ShapeDtypeStruct((MP, EMB), jnp.float32),
        grid=(1,),
        in_specs=[
            pl.BlockSpec((2, P), lambda i: (0, 0)),
            pl.BlockSpec((MP, IN_DIM), lambda i: (0, 0)),
            pl.BlockSpec((HID, 2), lambda i: (0, 0)),
            pl.BlockSpec((ROWP_ROWS, ROWP_W), lambda i: (0, 0)),
        ],
        out_specs=pl.BlockSpec((MP, EMB), lambda i: (0, 0)),
    )(dv, x_pad, colp, rowp)


# ---------------- pure-JAX reference (exact torch semantics) ----------------
def reference(x_nodes, dist, zero_mask, mask, b_idx, n_idx,
              w1, b1, w2, b2, wemb, bemb, w_enc, b_enc):
    gelu = lambda v: 0.5 * v * (1.0 + jax.scipy.special.erf(v / jnp.sqrt(2.0)))
    d = dist[..., None]                                        # (B,N,N,1)
    h = gelu(d * w1 + b1)                                      # (B,N,N,HID)
    y = gelu(jnp.sum(h * w2, axis=-1, keepdims=True) + b2)     # (B,N,N,1)
    dm = mask[:, :, None] & mask[:, None, :]                   # (B,N,N)
    y = jnp.where(zero_mask[..., None], 0.0, y)
    y = jnp.where(~dm[..., None], 0.0, y)
    s = jnp.sum(y, axis=-2)                                    # (B,N,1)
    pe = s * wemb + bemb                                       # (B,N,EMB)
    pe_valid = pe[b_idx, n_idx]                                # (M,EMB) == pe[batch.mask]
    return x_nodes @ w_enc + b_enc + pe_valid


if __name__ == "__main__":
    # node mask (concrete, so the x[batch.mask] gather has a static size)
    mask_np = np.zeros((B, N), dtype=bool)
    mask_np[0, :6] = True
    mask_np[1, :7] = True
    b_idx, n_idx = np.nonzero(mask_np)
    flat_idx = b_idx * N + n_idx                               # padded-row indices
    M = int(b_idx.shape[0])                                    # 13 valid nodes

    key = jax.random.PRNGKey(0)
    ks = jax.random.split(key, 10)

    # batch attributes
    raw = jax.random.uniform(ks[0], (B, N, N), dtype=jnp.float32)
    dist = 0.5 * (raw + jnp.swapaxes(raw, 1, 2)) * (1.0 - jnp.eye(N, dtype=jnp.float32))
    zero_mask = dist == 0.0                                    # batch.zero_distances_mask
    mask = jnp.asarray(mask_np)                                # batch.mask
    x_nodes = jax.random.normal(ks[1], (M, IN_DIM), dtype=jnp.float32)   # batch.x

    # parameters (deterministic synthetic init); stored as already-transposed matrices
    w1 = 0.3 * jax.random.normal(ks[2], (1, HID), dtype=jnp.float32)     # Linear(1,HID).weight.T
    b1 = 0.1 * jax.random.normal(ks[3], (1, HID), dtype=jnp.float32)
    w2 = 0.3 * jax.random.normal(ks[4], (1, HID), dtype=jnp.float32)     # Linear(HID,1).weight
    b2 = 0.1 * jax.random.normal(ks[5], (1, 1), dtype=jnp.float32)
    wemb = 0.3 * jax.random.normal(ks[6], (1, EMB), dtype=jnp.float32)   # Linear(1,EMB).weight.T
    bemb = 0.1 * jax.random.normal(ks[7], (1, EMB), dtype=jnp.float32)
    w_enc = 0.2 * jax.random.normal(ks[8], (IN_DIM, EMB), dtype=jnp.float32)  # Linear(IN,EMB).weight.T
    b_enc = 0.1 * jax.random.normal(ks[9], (1, EMB), dtype=jnp.float32)

    # dense-padded node features (zeros in padded rows); static host-side scatter
    x_pad = jnp.zeros((MP, IN_DIM), jnp.float32).at[flat_idx].set(x_nodes)

    # run the fused kernel once
    out_pad = linear_node_encoder(dist, zero_mask, mask, x_pad,
                                  w1, b1, w2, b2, wemb, bemb, w_enc, b_enc)   # (B*N, EMB)
    out = out_pad[flat_idx]          # x[batch.mask]: static gather on the tiny output
    out = jax.block_until_ready(out)

    # correctness check vs pure-JAX reference
    ref = reference(x_nodes, dist, zero_mask, mask, b_idx, n_idx,
                    w1, b1, w2, b2, wemb, bemb, w_enc, b_enc)
    assert out.shape == (M, EMB)
    assert jnp.allclose(out, ref, atol=1e-4, rtol=1e-4), (
        float(jnp.max(jnp.abs(out - ref))))

    print("KERNEL_OK")
</pallas_src>

<mosaic_0001>
module attributes {stable_mosaic.version = 11 : i64} {
  func.func @fused_encoder_kernel(%arg0: i32, %arg1: memref<2x128xf32, #tpu.memory_space<vmem>>, %arg2: memref<16x16xf32, #tpu.memory_space<vmem>>, %arg3: memref<50x2xf32, #tpu.memory_space<vmem>>, %arg4: memref<24x64xf32, #tpu.memory_space<vmem>>, %arg5: memref<16x32xf32, #tpu.memory_space<vmem>>) attributes {dimension_semantics = [#tpu.dimension_semantics<arbitrary>], iteration_bounds = array<i64: 1>, scalar_prefetch = 0 : i64, scratch_operands = 0 : i64, tpu.core_type = #tpu.core_type<tc>, window_params = [{pipeline_mode = #tpu.pipeline_mode<synchronous>, transform_indices = @transform_0, window_bounds = array<i64: 2, 128>}, {pipeline_mode = #tpu.pipeline_mode<synchronous>, transform_indices = @transform_1, window_bounds = array<i64: 16, 16>}, {pipeline_mode = #tpu.pipeline_mode<synchronous>, transform_indices = @transform_2, window_bounds = array<i64: 50, 2>}, {pipeline_mode = #tpu.pipeline_mode<synchronous>, transform_indices = @transform_3, window_bounds = array<i64: 24, 64>}, {pipeline_mode = #tpu.pipeline_mode<synchronous>, transform_indices = @transform_4, window_bounds = array<i64: 16, 32>}]} {
    %c0 = arith.constant 0 : index
    %c0_0 = arith.constant 0 : index
    %0 = vector.load %arg1[%c0, %c0_0] : memref<2x128xf32, #tpu.memory_space<vmem>>, vector<1x128xf32>
    %c1 = arith.constant 1 : index
    %c0_1 = arith.constant 0 : index
    %1 = vector.load %arg1[%c1, %c0_1] : memref<2x128xf32, #tpu.memory_space<vmem>>, vector<1x128xf32>
    %cst = arith.constant 5.000000e-01 : f32
    %2 = vector.broadcast %cst : f32 to vector<1x128xf32>
    %3 = arith.cmpf ogt, %1, %2 : vector<1x128xf32>
    %c0_2 = arith.constant 0 : index
    %c0_3 = arith.constant 0 : index
    %4 = vector.load %arg3[%c0_2, %c0_3] : memref<50x2xf32, #tpu.memory_space<vmem>>, vector<50x1xf32>
    %c0_4 = arith.constant 0 : index
    %c1_5 = arith.constant 1 : index
    %5 = vector.load %arg3[%c0_4, %c1_5] : memref<50x2xf32, #tpu.memory_space<vmem>>, vector<50x1xf32>
    %c0_6 = arith.constant 0 : index
    %c0_7 = arith.constant 0 : index
    %6 = vector.load %arg4[%c0_6, %c0_7] : memref<24x64xf32, #tpu.memory_space<vmem>>, vector<1x50xf32>
    %c1_8 = arith.constant 1 : index
    %c0_9 = arith.constant 0 : index
    %7 = vector.load %arg4[%c1_8, %c0_9] : memref<24x64xf32, #tpu.memory_space<vmem>>, vector<1x1xf32>
    %c2 = arith.constant 2 : index
    %c0_10 = arith.constant 0 : index
    %8 = vector.load %arg4[%c2, %c0_10] : memref<24x64xf32, #tpu.memory_space<vmem>>, vector<1x32xf32>
    %c3 = arith.constant 3 : index
    %c0_11 = arith.constant 0 : index
    %9 = vector.load %arg4[%c3, %c0_11] : memref<24x64xf32, #tpu.memory_space<vmem>>, vector<1x32xf32>
    %c8 = arith.constant 8 : index
    %c0_12 = arith.constant 0 : index
    %10 = vector.load %arg4[%c8, %c0_12] : memref<24x64xf32, #tpu.memory_space<vmem>>, vector<16x32xf32>
    %11 = vector.broadcast %4 : vector<50x1xf32> to vector<50x128xf32>
    %12 = vector.broadcast %0 : vector<1x128xf32> to vector<50x128xf32>
    %13 = arith.mulf %11, %12 : vector<50x128xf32>
    %14 = vector.broadcast %5 : vector<50x1xf32> to vector<50x128xf32>
    %15 = arith.addf %13, %14 : vector<50x128xf32>
    %cst_13 = arith.constant 5.000000e-01 : f32
    %16 = vector.broadcast %cst_13 : f32 to vector<50x128xf32>
    %17 = arith.mulf %16, %15 : vector<50x128xf32>
    %cst_14 = arith.constant 0.707106769 : f32
    %18 = vector.broadcast %cst_14 : f32 to vector<50x128xf32>
    %19 = arith.mulf %15, %18 : vector<50x128xf32>
    %cst_15 = arith.constant 0.000000e+00 : f32
    %20 = vector.broadcast %cst_15 : f32 to vector<50x128xf32>
    %21 = arith.cmpf oge, %19, %20 : vector<50x128xf32>
    %cst_16 = arith.constant 1.000000e+00 : f32
    %cst_17 = arith.constant -1.000000e+00 : f32
    %22 = vector.broadcast %cst_16 : f32 to vector<50x128xf32>
    %23 = vector.broadcast %cst_17 : f32 to vector<50x128xf32>
    %24 = arith.select %21, %22, %23 : vector<50x128xi1>, vector<50x128xf32>
    %25 = math.absf %19 : vector<50x128xf32>
    %cst_18 = arith.constant 0.327591091 : f32
    %26 = vector.broadcast %cst_18 : f32 to vector<50x128xf32>
    %27 = arith.mulf %26, %25 : vector<50x128xf32>
    %cst_19 = arith.constant 1.000000e+00 : f32
    %28 = vector.broadcast %cst_19 : f32 to vector<50x128xf32>
    %29 = arith.addf %28, %27 : vector<50x128xf32>
    %cst_20 = arith.constant 1.000000e+00 : f32
    %30 = vector.broadcast %cst_20 : f32 to vector<50x128xf32>
    %31 = arith.divf %30, %29 : vector<50x128xf32>
    %cst_21 = arith.constant 1.06140542 : f32
    %32 = vector.broadcast %cst_21 : f32 to vector<50x128xf32>
    %33 = arith.mulf %32, %31 : vector<50x128xf32>
    %cst_22 = arith.constant -1.45315206 : f32
    %34 = vector.broadcast %cst_22 : f32 to vector<50x128xf32>
    %35 = arith.addf %33, %34 : vector<50x128xf32>
    %36 = arith.mulf %35, %31 : vector<50x128xf32>
    %cst_23 = arith.constant 1.42141378 : f32
    %37 = vector.broadcast %cst_23 : f32 to vector<50x128xf32>
    %38 = arith.addf %36, %37 : vector<50x128xf32>
    %39 = arith.mulf %38, %31 : vector<50x128xf32>
    %cst_24 = arith.constant -0.284496725 : f32
    %40 = vector.broadcast %cst_24 : f32 to vector<50x128xf32>
    %41 = arith.addf %39, %40 : vector<50x128xf32>
    %42 = arith.mulf %41, %31 : vector<50x128xf32>
    %cst_25 = arith.constant 0.254829586 : f32
    %43 = vector.broadcast %cst_25 : f32 to vector<50x128xf32>
    %44 = arith.addf %42, %43 : vector<50x128xf32>
    %45 = arith.mulf %44, %31 : vector<50x128xf32>
    %cst_26 = arith.constant 0.000000e+00 : f32
    %46 = vector.broadcast %cst_26 : f32 to vector<50x128xf32>
    %47 = arith.subf %46, %25 : vector<50x128xf32>
    %48 = arith.mulf %47, %25 : vector<50x128xf32>
    %49 = math.exp %48 : vector<50x128xf32>
    %50 = arith.mulf %45, %49 : vector<50x128xf32>
    %cst_27 = arith.constant 1.000000e+00 : f32
    %51 = vector.broadcast %cst_27 : f32 to vector<50x128xf32>
    %52 = arith.subf %51, %50 : vector<50x128xf32>
    %53 = arith.mulf %24, %52 : vector<50x128xf32>
    %cst_28 = arith.constant 1.000000e+00 : f32
    %54 = vector.broadcast %cst_28 : f32 to vector<50x128xf32>
    %55 = arith.addf %54, %53 : vector<50x128xf32>
    %56 = arith.mulf %17, %55 : vector<50x128xf32>
    %cst_29 = arith.constant dense<0.000000e+00> : vector<1x128xf32>
    %57 = tpu.matmul %6, %56, %cst_29 {dimension_numbers = #tpu.dot_dimension_numbers<[1], [0], [0], [1], [0, 0, 1, 1], [], []>} : vector<1x50xf32>, vector<50x128xf32>, vector<1x128xf32> -> vector<1x128xf32>
    %58 = vector.broadcast %7 : vector<1x1xf32> to vector<1x128xf32>
    %59 = arith.addf %57, %58 : vector<1x128xf32>
    %cst_30 = arith.constant 5.000000e-01 : f32
    %60 = vector.broadcast %cst_30 : f32 to vector<1x128xf32>
    %61 = arith.mulf %60, %59 : vector<1x128xf32>
    %cst_31 = arith.constant 0.707106769 : f32
    %62 = vector.broadcast %cst_31 : f32 to vector<1x128xf32>
    %63 = arith.mulf %59, %62 : vector<1x128xf32>
    %cst_32 = arith.constant 0.000000e+00 : f32
    %64 = vector.broadcast %cst_32 : f32 to vector<1x128xf32>
    %65 = arith.cmpf oge, %63, %64 : vector<1x128xf32>
    %cst_33 = arith.constant 1.000000e+00 : f32
    %cst_34 = arith.constant -1.000000e+00 : f32
    %66 = vector.broadcast %cst_33 : f32 to vector<1x128xf32>
    %67 = vector.broadcast %cst_34 : f32 to vector<1x128xf32>
    %68 = arith.select %65, %66, %67 : vector<1x128xi1>, vector<1x128xf32>
    %69 = math.absf %63 : vector<1x128xf32>
    %cst_35 = arith.constant 0.327591091 : f32
    %70 = vector.broadcast %cst_35 : f32 to vector<1x128xf32>
    %71 = arith.mulf %70, %69 : vector<1x128xf32>
    %cst_36 = arith.constant 1.000000e+00 : f32
    %72 = vector.broadcast %cst_36 : f32 to vector<1x128xf32>
    %73 = arith.addf %72, %71 : vector<1x128xf32>
    %cst_37 = arith.constant 1.000000e+00 : f32
    %74 = vector.broadcast %cst_37 : f32 to vector<1x128xf32>
    %75 = arith.divf %74, %73 : vector<1x128xf32>
    %cst_38 = arith.constant 1.06140542 : f32
    %76 = vector.broadcast %cst_38 : f32 to vector<1x128xf32>
    %77 = arith.mulf %76, %75 : vector<1x128xf32>
    %cst_39 = arith.constant -1.45315206 : f32
    %78 = vector.broadcast %cst_39 : f32 to vector<1x128xf32>
    %79 = arith.addf %77, %78 : vector<1x128xf32>
    %80 = arith.mulf %79, %75 : vector<1x128xf32>
    %cst_40 = arith.constant 1.42141378 : f32
    %81 = vector.broadcast %cst_40 : f32 to vector<1x128xf32>
    %82 = arith.addf %80, %81 : vector<1x128xf32>
    %83 = arith.mulf %82, %75 : vector<1x128xf32>
    %cst_41 = arith.constant -0.284496725 : f32
    %84 = vector.broadcast %cst_41 : f32 to vector<1x128xf32>
    %85 = arith.addf %83, %84 : vector<1x128xf32>
    %86 = arith.mulf %85, %75 : vector<1x128xf32>
    %cst_42 = arith.constant 0.254829586 : f32
    %87 = vector.broadcast %cst_42 : f32 to vector<1x128xf32>
    %88 = arith.addf %86, %87 : vector<1x128xf32>
    %89 = arith.mulf %88, %75 : vector<1x128xf32>
    %cst_43 = arith.constant 0.000000e+00 : f32
    %90 = vector.broadcast %cst_43 : f32 to vector<1x128xf32>
    %91 = arith.subf %90, %69 : vector<1x128xf32>
    %92 = arith.mulf %91, %69 : vector<1x128xf32>
    %93 = math.exp %92 : vector<1x128xf32>
    %94 = arith.mulf %89, %93 : vector<1x128xf32>
    %cst_44 = arith.constant 1.000000e+00 : f32
    %95 = vector.broadcast %cst_44 : f32 to vector<1x128xf32>
    %96 = arith.subf %95, %94 : vector<1x128xf32>
    %97 = arith.mulf %68, %96 : vector<1x128xf32>
    %cst_45 = arith.constant 1.000000e+00 : f32
    %98 = vector.broadcast %cst_45 : f32 to vector<1x128xf32>
    %99 = arith.addf %98, %97 : vector<1x128xf32>
    %100 = arith.mulf %61, %99 : vector<1x128xf32>
    %cst_46 = arith.constant 0.000000e+00 : f32
    %101 = vector.broadcast %cst_46 : f32 to vector<1x128xf32>
    %102 = arith.select %3, %100, %101 : vector<1x128xi1>, vector<1x128xf32>
    %103 = tpu.iota {dimensions = array<i32: 0>} : vector<16x128xi32>
    %104 = tpu.iota {dimensions = array<i32: 1>} : vector<16x128xi32>
    %c8_i32 = arith.constant 8 : i32
    %105 = vector.broadcast %c8_i32 : i32 to vector<16x128xi32>
    %106 = arith.muli %103, %105 : vector<16x128xi32>
    %107 = arith.cmpi sge, %104, %106 : vector<16x128xi32>
    %c8_i32_47 = arith.constant 8 : i32
    %108 = vector.broadcast %c8_i32_47 : i32 to vector<16x128xi32>
    %109 = arith.addi %106, %108 : vector<16x128xi32>
    %110 = arith.cmpi slt, %104, %109 : vector<16x128xi32>
    %111 = arith.andi %107, %110 : vector<16x128xi1>
    %cst_48 = arith.constant 0.000000e+00 : f32
    %112 = vector.shape_cast %102 : vector<1x128xf32> to vector<1x128xf32>
    %113 = vector.broadcast %112 : vector<1x128xf32> to vector<16x128xf32>
    %114 = vector.broadcast %cst_48 : f32 to vector<16x128xf32>
    %115 = arith.select %111, %113, %114 : vector<16x128xi1>, vector<16x128xf32>
    %cst_49 = arith.constant dense<0.000000e+00> : vector<16xf32>
    %116 = vector.multi_reduction <add>, %115, %cst_49 [1] : vector<16x128xf32> to vector<16xf32>
    %117 = vector.shape_cast %116 : vector<16xf32> to vector<16x1xf32>
    %c0_50 = arith.constant 0 : index
    %c0_51 = arith.constant 0 : index
    %118 = vector.load %arg2[%c0_50, %c0_51] : memref<16x16xf32, #tpu.memory_space<vmem>>, vector<16x16xf32>
    %cst_52 = arith.constant dense<0.000000e+00> : vector<16x32xf32>
    %119 = tpu.matmul %118, %10, %cst_52 {dimension_numbers = #tpu.dot_dimension_numbers<[1], [0], [0], [1], [0, 0, 1, 1], [], []>} : vector<16x16xf32>, vector<16x32xf32>, vector<16x32xf32> -> vector<16x32xf32>
    %120 = vector.broadcast %117 : vector<16x1xf32> to vector<16x32xf32>
    %121 = vector.broadcast %8 : vector<1x32xf32> to vector<16x32xf32>
    %122 = arith.mulf %120, %121 : vector<16x32xf32>
    %123 = arith.addf %119, %122 : vector<16x32xf32>
    %124 = vector.broadcast %9 : vector<1x32xf32> to vector<16x32xf32>
    %125 = arith.addf %123, %124 : vector<16x32xf32>
    %c0_53 = arith.constant 0 : index
    %c0_54 = arith.constant 0 : index
    %126 = vector.load %arg5[%c0_53, %c0_54] : memref<16x32xf32, #tpu.memory_space<vmem>>, vector<16x32xf32>
    tpu.vector_store %arg5[%c0_53, %c0_54], %125 {strides = array<i32>} : memref<16x32xf32, #tpu.memory_space<vmem>>, vector<16x32xf32>,
    return
  }
  func.func @transform_0(%arg0: i32) -> (i32, i32) {
    %c0_i32 = arith.constant 0 : i32
    %c0_i32_0 = arith.constant 0 : i32
    %c0_i32_1 = arith.constant 0 : i32
    return %c0_i32, %c0_i32_0 : i32, i32
  }
  func.func @transform_1(%arg0: i32) -> (i32, i32) {
    %c0_i32 = arith.constant 0 : i32
    %c0_i32_0 = arith.constant 0 : i32
    %c0_i32_1 = arith.constant 0 : i32
    return %c0_i32, %c0_i32_0 : i32, i32
  }
  func.func @transform_2(%arg0: i32) -> (i32, i32) {
    %c0_i32 = arith.constant 0 : i32
    %c0_i32_0 = arith.constant 0 : i32
    %c0_i32_1 = arith.constant 0 : i32
    return %c0_i32, %c0_i32_0 : i32, i32
  }
  func.func @transform_3(%arg0: i32) -> (i32, i32) {
    %c0_i32 = arith.constant 0 : i32
    %c0_i32_0 = arith.constant 0 : i32
    %c0_i32_1 = arith.constant 0 : i32
    return %c0_i32, %c0_i32_0 : i32, i32
  }
  func.func @transform_4(%arg0: i32) -> (i32, i32) {
    %c0_i32 = arith.constant 0 : i32
    %c0_i32_0 = arith.constant 0 : i32
    %c0_i32_1 = arith.constant 0 : i32
    return %c0_i32, %c0_i32_0 : i32, i32
  }
}

</mosaic_0001>

<llo_original>
// kernel: tpu_custom_call.1
$region0: #{tpu_custom_call.1}
  #allocation0 [shape = 'u32[]', space=smem, size = 0x4, offset = 0x4, fixed_abs, tag = 'smem constant byte address 0x4 - core index']
  #allocation1 [shape = 'u32[144,128]{1,0:T(1,128)}', space=vmem, size = 0x12000, scoped, tag = 'internal scratch']
  %s0 = inlined_call_operand.vmem [shape: f32[2,128], index: 0, kind: input, shape index: {}]
  %s1 = inlined_call_operand.vmem [shape: f32[16,16], index: 1, kind: input, shape index: {}]
  %s2 = inlined_call_operand.vmem [shape: f32[50,2], index: 2, kind: input, shape index: {}]
  %s3 = inlined_call_operand.vmem [shape: f32[24,64], index: 3, kind: input, shape index: {}]
  %s4 = inlined_call_operand.hbm [shape: f32[16,32], index: 4, kind: output, shape index: {}]
  %s5 = sld [smem:[#allocation0]]
  $region26: #{tpu_custom_call.1} parent=0
    _
  %s7 = ssub.s32 1, %s5
  %s8 = scalar_select 0, %s7, %s5
  $region1: #{tpu_custom_call.1} parent=0
    #allocation2 [shape = 'u8[8192]{0}', space=vmem, size = 0x2000, scoped, tag = 'output window, operand 0, single buffered']
    #allocation3 [shape = 's32[1]{0}', space=sflag, size = 0x4, scoped, tag = 'scoped memory for tpu_custom_call.1']
    %9 = vsyncpa [#allocation3], 0
    // Predicated region
    $region2: #{tpu_custom_call.1} parent=1 // pred_check
      _
    $region3: #{tpu_custom_call.1} parent=1 // pred_check_branch
      %11 = sbr.rel (0) target = $region5
    $region4: #{tpu_custom_call.1} parent=1 // pred_region
      _
    $region5: #{tpu_custom_call.1} parent=1 // pred_fallthru
      _
    // Predicated region
    $region6: #{tpu_custom_call.1} parent=1 // pred_check
      _
    $region7: #{tpu_custom_call.1} parent=1 // pred_check_branch
      %13 = sbr.rel (0) target = $region9
    $region8: #{tpu_custom_call.1} parent=1 // pred_region
      _
    $region9: #{tpu_custom_call.1} parent=1 // pred_fallthru
      _
    // Predicated region
    $region10: #{tpu_custom_call.1} parent=1 // pred_check
      _
    $region11: #{tpu_custom_call.1} parent=1 // pred_check_branch
      %15 = sbr.rel (0) target = $region13
    $region12: #{tpu_custom_call.1} parent=1 // pred_region
      _
    $region13: #{tpu_custom_call.1} parent=1 // pred_fallthru
      _
    // Predicated region
    $region14: #{tpu_custom_call.1} parent=1 // pred_check
      _
    $region15: #{tpu_custom_call.1} parent=1 // pred_check_branch
      %17 = sbr.rel (0) target = $region17
    $region16: #{tpu_custom_call.1} parent=1 // pred_region
      _
    $region17: #{tpu_custom_call.1} parent=1 // pred_fallthru
      _
    %v18 = vld [vmem:[%s0] sm:$0x1]
    %v19 = vld [vmem:[%s0 + $0x1] sm:$0x1]
    %vm20 = vcmp.gt.f32.partialorder %v19, 0.5
    %v21 = vld [vmem:[%s2] sm:$0xff]
    %v22 = vld [vmem:[%s2 + $0x8] sm:$0xff]
    %v23 = vld [vmem:[%s2 + $0x10] sm:$0xff]
    %v24 = vld [vmem:[%s2 + $0x18] sm:$0xff]
    %v25 = vld [vmem:[%s2 + $0x20] sm:$0xff]
    %v26 = vld [vmem:[%s2 + $0x28] sm:$0xff]
    %v27 = vld [vmem:[%s2 + $0x30] sm:$0x3]
    %v28 = vld [vmem:[%s3] sm:$0x1]
    %v29 = vld [vmem:[%s3 + $0x1] sm:$0x1]
    %v30 = vld [vmem:[%s3 + $0x2] sm:$0x1]
    %v31 = vld [vmem:[%s3 + $0x3] sm:$0x1]
    %v32 = vld [vmem:[%s3 + $0x8] sm:$0xff]
    %v33 = vld [vmem:[%s3 + $0x10] sm:$0xff]
    %35 = vset.pattern.permute.xlu0 0
    %36 = vperm.xlu0 %35, %v21
    %v37 = vpop.permute.xlu0 %36
    %40 = vset.pattern.permute.xlu0 0
    %41 = vperm.xlu0 %40, %v22
    %v42 = vpop.permute.xlu0 %41
    %45 = vset.pattern.permute.xlu0 0
    %46 = vperm.xlu0 %45, %v23
    %v47 = vpop.permute.xlu0 %46
    %50 = vset.pattern.permute.xlu0 0
    %51 = vperm.xlu0 %50, %v24
    %v52 = vpop.permute.xlu0 %51
    %55 = vset.pattern.permute.xlu0 0
    %56 = vperm.xlu0 %55, %v25
    %v57 = vpop.permute.xlu0 %56
    %60 = vset.pattern.permute.xlu0 0
    %61 = vperm.xlu0 %60, %v26
    %v62 = vpop.permute.xlu0 %61
    %65 = vset.pattern.permute.xlu0 0
    %66 = vperm.xlu0 %65, %v27
    %v67 = vpop.permute.xlu0 %66
    %v69 = vlaneseq
    %v70 = vshrl.u32 %v69, 7
    %v71 = vsub.s32 0, %v70
    %v72 = vrot.slane %v18, %v71
    %v73 = vmul.f32 %v37, %v72
    %v74 = vmul.f32 %v42, %v72
    %v75 = vmul.f32 %v47, %v72
    %v76 = vmul.f32 %v52, %v72
    %v77 = vmul.f32 %v57, %v72
    %v78 = vmul.f32 %v62, %v72
    %v79 = vmul.f32 %v67, %v72
    %80 = vset.pattern.permute.xlu0 1
    %81 = vperm.xlu0 %80, %v21
    %v82 = vpop.permute.xlu0 %81
    %84 = vset.pattern.permute.xlu0 1
    %85 = vperm.xlu0 %84, %v22
    %v86 = vpop.permute.xlu0 %85
    %88 = vset.pattern.permute.xlu0 1
    %89 = vperm.xlu0 %88, %v23
    %v90 = vpop.permute.xlu0 %89
    %92 = vset.pattern.permute.xlu0 1
    %93 = vperm.xlu0 %92, %v24
    %v94 = vpop.permute.xlu0 %93
    %96 = vset.pattern.permute.xlu0 1
    %97 = vperm.xlu0 %96, %v25
    %v98 = vpop.permute.xlu0 %97
    %100 = vset.pattern.permute.xlu0 1
    %101 = vperm.xlu0 %100, %v26
    %v102 = vpop.permute.xlu0 %101
    %104 = vset.pattern.permute.xlu0 1
    %105 = vperm.xlu0 %104, %v27
    %v106 = vpop.permute.xlu0 %105
    %v108 = vadd.f32 %v73, %v82
    %v109 = vadd.f32 %v74, %v86
    %v110 = vadd.f32 %v75, %v90
    %v111 = vadd.f32 %v76, %v94
    %v112 = vadd.f32 %v77, %v98
    %v113 = vadd.f32 %v78, %v102
    %v114 = vadd.f32 %v79, %v106
    %v115 = vmul.f32 %v108, 0.5
    %v116 = vmul.f32 %v109, 0.5
    %v117 = vmul.f32 %v110, 0.5
    %v118 = vmul.f32 %v111, 0.5
    %v119 = vmul.f32 %v112, 0.5
    %v120 = vmul.f32 %v113, 0.5
    %v121 = vmul.f32 %v114, 0.5
    %v122 = vmul.f32 %v108, 0.70710677
    %v123 = vmul.f32 %v109, 0.70710677
    %v124 = vmul.f32 %v110, 0.70710677
    %v125 = vmul.f32 %v111, 0.70710677
    %v126 = vmul.f32 %v112, 0.70710677
    %v127 = vmul.f32 %v113, 0.70710677
    %v128 = vmul.f32 %v114, 0.70710677
    %vm129 = vcmp.ge.f32.partialorder %v122, 0.0
    %vm130 = vcmp.ge.f32.partialorder %v123, 0.0
    %vm131 = vcmp.ge.f32.partialorder %v124, 0.0
    %vm132 = vcmp.ge.f32.partialorder %v125, 0.0
    %vm133 = vcmp.ge.f32.partialorder %v126, 0.0
    %vm134 = vcmp.ge.f32.partialorder %v127, 0.0
    %vm135 = vcmp.ge.f32.partialorder %v128, 0.0
    %v136 = vsel %vm129, 1.0, -1.0
    %v137 = vsel %vm130, 1.0, -1.0
    %v138 = vsel %vm131, 1.0, -1.0
    %v139 = vsel %vm132, 1.0, -1.0
    %v140 = vsel %vm133, 1.0, -1.0
    %v141 = vsel %vm134, 1.0, -1.0
    %v142 = vsel %vm135, 1.0, -1.0
    %v143 = vand.u32 2147483647, %v122
    %v144 = vand.u32 2147483647, %v123
    %v145 = vand.u32 2147483647, %v124
    %v146 = vand.u32 2147483647, %v125
    %v147 = vand.u32 2147483647, %v126
    %v148 = vand.u32 2147483647, %v127
    %v149 = vand.u32 2147483647, %v128
    %v150 = vmul.f32 %v143, 0.3275911
    %v151 = vmul.f32 %v144, 0.3275911
    %v152 = vmul.f32 %v145, 0.3275911
    %v153 = vmul.f32 %v146, 0.3275911
    %v154 = vmul.f32 %v147, 0.3275911
    %v155 = vmul.f32 %v148, 0.3275911
    %v156 = vmul.f32 %v149, 0.3275911
    %v157 = vadd.f32 %v150, 1.0
    %v158 = vadd.f32 %v151, 1.0
    %v159 = vadd.f32 %v152, 1.0
    %v160 = vadd.f32 %v153, 1.0
    %v161 = vadd.f32 %v154, 1.0
    %v162 = vadd.f32 %v155, 1.0
    %v163 = vadd.f32 %v156, 1.0
    %v164 = vrcp.pop %v157
    %v165 = vmul.f32 1.0, %v164
    %v166 = vrcp.pop %v158
    %v167 = vmul.f32 1.0, %v166
    %v168 = vrcp.pop %v159
    %v169 = vmul.f32 1.0, %v168
    %v170 = vrcp.pop %v160
    %v171 = vmul.f32 1.0, %v170
    %v172 = vrcp.pop %v161
    %v173 = vmul.f32 1.0, %v172
    %v174 = vrcp.pop %v162
    %v175 = vmul.f32 1.0, %v174
    %v176 = vrcp.pop %v163
    %v177 = vmul.f32 1.0, %v176
    %v178 = vmul.f32 %v165, 1.0614054
    %v179 = vmul.f32 %v167, 1.0614054
    %v180 = vmul.f32 %v169, 1.0614054
    %v181 = vmul.f32 %v171, 1.0614054
    %v182 = vmul.f32 %v173, 1.0614054
    %v183 = vmul.f32 %v175, 1.0614054
    %v184 = vmul.f32 %v177, 1.0614054
    %v185 = vadd.f32 %v178, -1.4531521
    %v186 = vadd.f32 %v179, -1.4531521
    %v187 = vadd.f32 %v180, -1.4531521
    %v188 = vadd.f32 %v181, -1.4531521
    %v189 = vadd.f32 %v182, -1.4531521
    %v190 = vadd.f32 %v183, -1.4531521
    %v191 = vadd.f32 %v184, -1.4531521
    %v192 = vmul.f32 %v185, %v165
    %v193 = vmul.f32 %v186, %v167
    %v194 = vmul.f32 %v187, %v169
    %v195 = vmul.f32 %v188, %v171
    %v196 = vmul.f32 %v189, %v173
    %v197 = vmul.f32 %v190, %v175
    %v198 = vmul.f32 %v191, %v177
    %v199 = vadd.f32 %v192, 1.4214138
    %v200 = vadd.f32 %v193, 1.4214138
    %v201 = vadd.f32 %v194, 1.4214138
    %v202 = vadd.f32 %v195, 1.4214138
    %v203 = vadd.f32 %v196, 1.4214138
    %v204 = vadd.f32 %v197, 1.4214138
    %v205 = vadd.f32 %v198, 1.4214138
    %v206 = vmul.f32 %v199, %v165
    %v207 = vmul.f32 %v200, %v167
    %v208 = vmul.f32 %v201, %v169
    %v209 = vmul.f32 %v202, %v171
    %v210 = vmul.f32 %v203, %v173
    %v211 = vmul.f32 %v204, %v175
    %v212 = vmul.f32 %v205, %v177
    %v213 = vadd.f32 %v206, -0.28449672
    %v214 = vadd.f32 %v207, -0.28449672
    %v215 = vadd.f32 %v208, -0.28449672
    %v216 = vadd.f32 %v209, -0.28449672
    %v217 = vadd.f32 %v210, -0.28449672
    %v218 = vadd.f32 %v211, -0.28449672
    %v219 = vadd.f32 %v212, -0.28449672
    %v220 = vmul.f32 %v213, %v165
    %v221 = vmul.f32 %v214, %v167
    %v222 = vmul.f32 %v215, %v169
    %v223 = vmul.f32 %v216, %v171
    %v224 = vmul.f32 %v217, %v173
    %v225 = vmul.f32 %v218, %v175
    %v226 = vmul.f32 %v219, %v177
    %v227 = vadd.f32 %v220, 0.2548296
    %v228 = vadd.f32 %v221, 0.2548296
    %v229 = vadd.f32 %v222, 0.2548296
    %v230 = vadd.f32 %v223, 0.2548296
    %v231 = vadd.f32 %v224, 0.2548296
    %v232 = vadd.f32 %v225, 0.2548296
    %v233 = vadd.f32 %v226, 0.2548296
    %v234 = vmul.f32 %v227, %v165
    %v235 = vmul.f32 %v228, %v167
    %v236 = vmul.f32 %v229, %v169
    %v237 = vmul.f32 %v230, %v171
    %v238 = vmul.f32 %v231, %v173
    %v239 = vmul.f32 %v232, %v175
    %v240 = vmul.f32 %v233, %v177
    %v241 = vsub.f32 0.0, %v143
    %v242 = vsub.f32 0.0, %v144
    %v243 = vsub.f32 0.0, %v145
    %v244 = vsub.f32 0.0, %v146
    %v245 = vsub.f32 0.0, %v147
    %v246 = vsub.f32 0.0, %v148
    %v247 = vsub.f32 0.0, %v149
    %v248 = vmul.f32 %v241, %v143
    %v249 = vmul.f32 %v242, %v144
    %v250 = vmul.f32 %v243, %v145
    %v251 = vmul.f32 %v244, %v146
    %v252 = vmul.f32 %v245, %v147
    %v253 = vmul.f32 %v246, %v148
    %v254 = vmul.f32 %v247, %v149
    %v255 = vmul.f32 %v248, 1.442695
    %v256 = vpow.pop %v255
    %v257 = vmul.f32 %v249, 1.442695
    %v258 = vpow.pop %v257
    %v259 = vmul.f32 %v250, 1.442695
    %v260 = vpow.pop %v259
    %v261 = vmul.f32 %v251, 1.442695
    %v262 = vpow.pop %v261
    %v263 = vmul.f32 %v252, 1.442695
    %v264 = vpow.pop %v263
    %v265 = vmul.f32 %v253, 1.442695
    %v266 = vpow.pop %v265
    %v267 = vmul.f32 %v254, 1.442695
    %v268 = vpow.pop %v267
    %v269 = vmul.f32 %v234, %v256
    %v270 = vmul.f32 %v235, %v258
    %v271 = vmul.f32 %v236, %v260
    %v272 = vmul.f32 %v237, %v262
    %v273 = vmul.f32 %v238, %v264
    %v274 = vmul.f32 %v239, %v266
    %v275 = vmul.f32 %v240, %v268
    %v276 = vsub.f32 1.0, %v269
    %v277 = vsub.f32 1.0, %v270
    %v278 = vsub.f32 1.0, %v271
    %v279 = vsub.f32 1.0, %v272
    %v280 = vsub.f32 1.0, %v273
    %v281 = vsub.f32 1.0, %v274
    %v282 = vsub.f32 1.0, %v275
    %v283 = vmul.f32 %v136, %v276
    %v284 = vmul.f32 %v137, %v277
    %v285 = vmul.f32 %v138, %v278
    %v286 = vmul.f32 %v139, %v279
    %v287 = vmul.f32 %v140, %v280
    %v288 = vmul.f32 %v141, %v281
    %v289 = vmul.f32 %v142, %v282
    %v290 = vadd.f32 %v283, 1.0
    %v291 = vadd.f32 %v284, 1.0
    %v292 = vadd.f32 %v285, 1.0
    %v293 = vadd.f32 %v286, 1.0
    %v294 = vadd.f32 %v287, 1.0
    %v295 = vadd.f32 %v288, 1.0
    %v296 = vadd.f32 %v289, 1.0
    %v297 = vmul.f32 %v115, %v290
    %v298 = vmul.f32 %v116, %v291
    %v299 = vmul.f32 %v117, %v292
    %v300 = vmul.f32 %v118, %v293
    %v301 = vmul.f32 %v119, %v294
    %v302 = vmul.f32 %v120, %v295
    %v303 = vmul.f32 %v121, %v296
    %305 = vset.pattern.permute.xlu0 0
    %306 = vperm.xlu0 %305, %v29
    %v307 = vpop.permute.xlu0 %306
    %vm309 = vcmask 408576
    %v311 = vsel %vm309, %v28, 0
    %vm313 = vcmask 1041408
    %v315 = vsel %vm313, %v303, 0
    %317 = vmatprep.subr.mxu0 0.0
    %318 = vmatpush1.msra.mxu0 %v297
    %319 = vmatprep.subr.mxu0 0.0
    %320 = vmatpush1.msra.mxu0 %v298
    %321 = vmatprep.subr.mxu0 0.0
    %322 = vmatpush1.msra.mxu0 %v299
    %323 = vmatprep.subr.mxu0 0.0
    %324 = vmatpush1.msra.mxu0 %v300
    %325 = vmatprep.subr.mxu0 0.0
    %326 = vmatpush1.msra.mxu0 %v301
    %327 = vmatprep.subr.mxu0 0.0
    %328 = vmatpush1.msra.mxu0 %v302
    %329 = vmatprep.subr.mxu0 0.0
    %330 = vmatpush1.msra.mxu0 %v315
    %331 = vmatprep.subr.mxu0 0.0
    %332 = vmatpush1.msra.mxu0 0.0
    %333 = vmatprep.subr.mxu0 0.0
    %334 = vmatpush1.msra.mxu0 0.0
    %335 = vmatprep.subr.mxu0 0.0
    %336 = vmatpush1.msra.mxu0 0.0
    %337 = vmatprep.subr.mxu0 0.0
    %338 = vmatpush1.msra.mxu0 0.0
    %339 = vmatprep.subr.mxu0 0.0
    %340 = vmatpush1.msra.mxu0 0.0
    %341 = vmatprep.subr.mxu0 0.0
    %342 = vmatpush1.msra.mxu0 0.0
    %343 = vmatprep.subr.mxu0 0.0
    %344 = vmatpush1.msra.mxu0 0.0
    %345 = vmatprep.subr.mxu0 0.0
    %346 = vmatpush1.msra.mxu0 0.0
    %347 = vmatprep.subr.mxu0 0.0
    %348 = vmatpush1.msra.mxu0 0.0
    %349 = vmatprep.subr.mxu0 0.0
    %350 = vmatpush1.msra.mxu0 0.0
    %351 = vmatprep.subr.mxu0 0.0
    %352 = vmatpush1.msra.mxu0 0.0
    %353 = vmatprep.subr.mxu0 0.0
    %354 = vmatpush1.msra.mxu0 0.0
    %355 = vmatprep.subr.mxu0 0.0
    %356 = vmatpush1.msra.mxu0 0.0
    %357 = vmatprep.subr.mxu0 0.0
    %358 = vmatpush1.msra.mxu0 0.0
    %359 = vmatprep.subr.mxu0 0.0
    %360 = vmatpush1.msra.mxu0 0.0
    %361 = vmatprep.subr.mxu0 0.0
    %362 = vmatpush1.msra.mxu0 0.0
    %363 = vmatprep.subr.mxu0 0.0
    %364 = vmatpush1.msra.mxu0 0.0
    %365 = vmatprep.subr.mxu0 0.0
    %366 = vmatpush1.msra.mxu0 0.0
    %367 = vmatprep.subr.mxu0 0.0
    %368 = vmatpush1.msra.mxu0 0.0
    %369 = vmatprep.subr.mxu0 0.0
    %370 = vmatpush1.msra.mxu0 0.0
    %371 = vmatprep.subr.mxu0 0.0
    %372 = vmatpush1.msra.mxu0 0.0
    %373 = vmatprep.subr.mxu0 0.0
    %374 = vmatpush1.msra.mxu0 0.0
    %375 = vmatprep.subr.mxu0 0.0
    %376 = vmatpush1.msra.mxu0 0.0
    %377 = vmatprep.subr.mxu0 0.0
    %378 = vmatpush1.msra.mxu0 0.0
    %379 = vmatprep.subr.mxu0 0.0
    %380 = vmatpush1.msra.mxu0 0.0
    %381 = vmatprep.mubr.f32.mxu0 0.0
    %382 = vmatmul.mubr.f32.gmra.mrb[0].mxu0 %v311
    %v383 = vpop.f32.mrb[0].mxu0
    %v384 = vadd.f32 %v307, %v383
    %v385 = vpop.f32.mrb[0].mxu0
    %386 = vdwg.mxu0
    %v387 = vmul.f32 %v384, 0.5
    %v388 = vmul.f32 %v384, 0.70710677
    %vm389 = vcmp.ge.f32.partialorder %v388, 0.0
    %v390 = vsel %vm389, 1.0, -1.0
    %v391 = vand.u32 2147483647, %v388
    %v392 = vmul.f32 %v391, 0.3275911
    %v393 = vadd.f32 %v392, 1.0
    %v394 = vrcp.pop %v393
    %v395 = vmul.f32 1.0, %v394
    %v396 = vmul.f32 %v395, 1.0614054
    %v397 = vadd.f32 %v396, -1.4531521
    %v398 = vmul.f32 %v397, %v395
    %v399 = vadd.f32 %v398, 1.4214138
    %v400 = vmul.f32 %v399, %v395
    %v401 = vadd.f32 %v400, -0.28449672
    %v402 = vmul.f32 %v401, %v395
    %v403 = vadd.f32 %v402, 0.2548296
    %v404 = vmul.f32 %v403, %v395
    %v405 = vsub.f32 0.0, %v391
    %v406 = vmul.f32 %v405, %v391
    %v407 = vmul.f32 %v406, 1.442695
    %v408 = vpow.pop %v407
    %v409 = vmul.f32 %v404, %v408
    %v410 = vsub.f32 1.0, %v409
    %v411 = vmul.f32 %v390, %v410
    %v412 = vadd.f32 %v411, 1.0
    %v413 = vmul.f32 %v387, %v412
    %v414 = vsel %vm20, %v413, 0.0
    %v415 = vlaneseq
    %v416 = vshrl.u32 %v415, 7
    %v417 = vadd.s32 %v416, 8
    %v418 = vlaneseq
    %v419 = vand.u32 %v418, 127
    %v420 = vmul.u32 %v416, 8
    %v421 = vmul.u32 %v417, 8
    %vm422 = vcmp.ge.s32.totalorder %v419, %v420
    %vm423 = vcmp.ge.s32.totalorder %v419, %v421
    %v424 = vadd.s32 %v420, 8
    %v425 = vadd.s32 %v421, 8
    %vm426 = vcmp.lt.s32.totalorder %v419, %v424
    %vm427 = vcmp.lt.s32.totalorder %v419, %v425
    %vm428 = vmand %vm422, %vm426
    %vm429 = vmand %vm423, %vm427
    %v430 = vlaneseq
    %v431 = vshrl.u32 %v430, 7
    %v432 = vsub.s32 0, %v431
    %v433 = vrot.slane %v414, %v432
    %v434 = vsel %vm428, %v433, 0.0
    %v435 = vsel %vm429, %v433, 0.0
    %436 = vadd.xlane.f32.xlu0 %v434
    %v437 = vpop.xlane.xlu0 %436
    %438 = vadd.xlane.f32.xlu0 %v435
    %v439 = vpop.xlane.xlu0 %438
    %v440 = vld [vmem:[%s1] sm:$0xff]
    %v441 = vld [vmem:[%s1 + $0x8] sm:$0xff]
    %v442 = vlaneseq
    %v443 = vshrl.u32 %v442, 7
    %v444 = vsub.s32 0, %v443
    %v445 = vrot.slane %v30, %v444
    %v446 = vmul.f32 %v437, %v445
    %v447 = vmul.f32 %v439, %v445
    %vm448 = vcmask 130048
    %v450 = vsel %vm448, %v440, 0
    %v453 = vsel %vm448, %v441, 0
    %455 = vmatprep.subr.mxu0 0.0
    %456 = vmatpush1.msra.mxu0 %v32
    %457 = vmatprep.subr.mxu0 0.0
    %458 = vmatpush1.msra.mxu0 %v33
    %459 = vmatprep.subr.mxu0 0.0
    %460 = vmatpush1.msra.mxu0 0.0
    %461 = vmatprep.subr.mxu0 0.0
    %462 = vmatpush1.msra.mxu0 0.0
    %463 = vmatprep.subr.mxu0 0.0
    %464 = vmatpush1.msra.mxu0 0.0
    %465 = vmatprep.subr.mxu0 0.0
    %466 = vmatpush1.msra.mxu0 0.0
    %467 = vmatprep.subr.mxu0 0.0
    %468 = vmatpush1.msra.mxu0 0.0
    %469 = vmatprep.subr.mxu0 0.0
    %470 = vmatpush1.msra.mxu0 0.0
    %471 = vmatprep.subr.mxu0 0.0
    %472 = vmatpush1.msra.mxu0 0.0
    %473 = vmatprep.subr.mxu0 0.0
    %474 = vmatpush1.msra.mxu0 0.0
    %475 = vmatprep.subr.mxu0 0.0
    %476 = vmatpush1.msra.mxu0 0.0
    %477 = vmatprep.subr.mxu0 0.0
    %478 = vmatpush1.msra.mxu0 0.0
    %479 = vmatprep.subr.mxu0 0.0
    %480 = vmatpush1.msra.mxu0 0.0
    %481 = vmatprep.subr.mxu0 0.0
    %482 = vmatpush1.msra.mxu0 0.0
    %483 = vmatprep.subr.mxu0 0.0
    %484 = vmatpush1.msra.mxu0 0.0
    %485 = vmatprep.subr.mxu0 0.0
    %486 = vmatpush1.msra.mxu0 0.0
    %487 = vmatprep.subr.mxu0 0.0
    %488 = vmatpush1.msra.mxu0 0.0
    %489 = vmatprep.subr.mxu0 0.0
    %490 = vmatpush1.msra.mxu0 0.0
    %491 = vmatprep.subr.mxu0 0.0
    %492 = vmatpush1.msra.mxu0 0.0
    %493 = vmatprep.subr.mxu0 0.0
    %494 = vmatpush1.msra.mxu0 0.0
    %495 = vmatprep.subr.mxu0 0.0
    %496 = vmatpush1.msra.mxu0 0.0
    %497 = vmatprep.subr.mxu0 0.0
    %498 = vmatpush1.msra.mxu0 0.0
    %499 = vmatprep.subr.mxu0 0.0
    %500 = vmatpush1.msra.mxu0 0.0
    %501 = vmatprep.subr.mxu0 0.0
    %502 = vmatpush1.msra.mxu0 0.0
    %503 = vmatprep.subr.mxu0 0.0
    %504 = vmatpush1.msra.mxu0 0.0
    %505 = vmatprep.subr.mxu0 0.0
    %506 = vmatpush1.msra.mxu0 0.0
    %507 = vmatprep.subr.mxu0 0.0
    %508 = vmatpush1.msra.mxu0 0.0
    %509 = vmatprep.subr.mxu0 0.0
    %510 = vmatpush1.msra.mxu0 0.0
    %511 = vmatprep.subr.mxu0 0.0
    %512 = vmatpush1.msra.mxu0 0.0
    %513 = vmatprep.subr.mxu0 0.0
    %514 = vmatpush1.msra.mxu0 0.0
    %515 = vmatprep.subr.mxu0 0.0
    %516 = vmatpush1.msra.mxu0 0.0
    %517 = vmatprep.subr.mxu0 0.0
    %518 = vmatpush1.msra.mxu0 0.0
    %519 = vmatprep.mubr.f32.mxu0 0.0
    %520 = vmatmul.mubr.f32.gmra.mrb[0].mxu0 %v450
    %v521 = vpop.f32.mrb[0].mxu0
    %v522 = vadd.f32 %v446, %v521
    %v523 = vpop.f32.mrb[0].mxu0
    %524 = vmatprep.mubr.f32.mxu0 0.0
    %525 = vmatmul.mubr.f32.gmra.mrb[0].mxu0 %v453
    %v526 = vpop.f32.mrb[0].mxu0
    %v527 = vadd.f32 %v447, %v526
    %v528 = vpop.f32.mrb[0].mxu0
    %529 = vdwg.mxu0
    %v530 = vlaneseq
    %v531 = vshrl.u32 %v530, 7
    %v532 = vsub.s32 0, %v531
    %v533 = vrot.slane %v31, %v532
    %v534 = vadd.f32 %v522, %v533
    %v535 = vadd.f32 %v527, %v533
    %vm536 = vcmask 261120
    %537 = vst.msk [vmem:[#allocation2] sm:$0xff] %vm536, %v534
    %538 = vst.msk [vmem:[#allocation2 + $0x8] sm:$0xff] %vm536, %v535
    // Predicated region
    $region18: #{tpu_custom_call.1} parent=1 // pred_check
      _
    $region19: #{tpu_custom_call.1} parent=1 // pred_check_branch
      %540 = sbr.rel (0) target = $region21
    $region20: #{tpu_custom_call.1} parent=1 // pred_region
      %s542 = ssub.s32 256, 256
      %543 = vsyncadd [#allocation3], %s542
      %s544 = sshll.u32 [#allocation2], 4
      %s545 = int_to_ptr.vmem [resolvable:$true] %s544
      %550 = dma.vmem_to_hbm [thread:$0]  %s545, 256, %s4, [#allocation3], 128, 128, 8
    $region21: #{tpu_custom_call.1} parent=1 // pred_fallthru
      _
    // Predicated region
    $region22: #{tpu_custom_call.1} parent=1 // pred_check
      _
    $region23: #{tpu_custom_call.1} parent=1 // pred_check_branch
      %552 = sbr.rel (0) target = $region25
    $region24: #{tpu_custom_call.1} parent=1 // pred_region
      %553 = dma.done [#allocation3], 256
    $region25: #{tpu_custom_call.1} parent=1 // pred_fallthru
      _
    %554 = vsyncpa [#allocation3], 1

</llo_original>
